<compile_context>
chip_gen: v6e
topology: v6e:2x2x1
jax: 0.10.0
libtpu: 0.0.40
codegen_flags: <defaults>
</compile_context>

<pallas_src>
import jax
import jax.numpy as jnp
from jax import lax
from jax.experimental import pallas as pl
from jax.experimental.pallas import tpu as pltpu

KH, KW, STRIDE, POOL = 3, 3, 2, 4


# ----------------------------------------------------------------------------
# Geometry shared by prep / wrapper / kernel
# ----------------------------------------------------------------------------
def _geometry(H, W):
    OH1 = (H - KH) // STRIDE + 1
    OW1 = (W - KW) // STRIDE + 1
    OH2 = (OH1 - KH) // STRIDE + 1
    OW2 = (OW1 - KW) // STRIDE + 1
    PH = (OH2 - POOL) // POOL + 1
    PW = (OW2 - POOL) // POOL + 1
    assert PH >= 1 and PW >= 1, "input too small for the 4x4/4 max-pool"
    H2n, W2n = POOL * PH, POOL * PW          # conv2 region feeding the pool
    H1n, W1n = 2 * H2n + 1, 2 * W2n + 1      # conv1 region feeding that
    return PH, PW, H1n, W1n, H2n, W2n


# ----------------------------------------------------------------------------
# One-time, weight-only preprocessing (hoisted out of the per-call path)
# ----------------------------------------------------------------------------
def _make_row_toeplitz(w_tap, in_len, n_out, stride):
    """w_tap: (KW, Cin, Cout). Returns (in_len*Cin, n_out*Cout) with
    T[(stride*q + j)*Cin + c, q*Cout + co] = w_tap[j, c, co]."""
    KWd, Cin, Cout = w_tap.shape
    T = jnp.zeros((in_len, Cin, n_out, Cout), w_tap.dtype)
    for q in range(n_out):
        T = T.at[stride * q: stride * q + KWd, :, q, :].set(w_tap)
    return T.reshape(in_len * Cin, n_out * Cout)


def prepare_params(w1, b1, w2, b2, H, W):
    """Call ONCE per (weights, image size); returns kernel-ready constants."""
    _, _, H1n, W1n, _, W2n = _geometry(H, W)
    bf16 = jnp.bfloat16
    w1t = jnp.transpose(w1, (2, 3, 1, 0)).astype(bf16)   # (KH, KW, Cin, C1)
    w2t = jnp.transpose(w2, (2, 3, 1, 0)).astype(bf16)   # (KH, KW, C1,  C2)
    # Stack the KH per-row Toeplitz blocks along K so each conv is ONE matmul.
    t1s = jnp.concatenate(
        [_make_row_toeplitz(w1t[i], W, W1n, STRIDE) for i in range(KH)], axis=0)
    t2s = jnp.concatenate(
        [_make_row_toeplitz(w2t[i], W1n, W2n, STRIDE) for i in range(KH)], axis=0)
    b1r = jnp.tile(b1, W1n)[None, :].astype(jnp.float32)   # (1, W1n*C1)
    b2r = jnp.tile(b2, W2n)[None, :].astype(jnp.float32)   # (1, W2n*C2)
    return t1s, b1r, t2s, b2r


# ----------------------------------------------------------------------------
# Fused kernel: conv1 + bias + ELU  ->  conv2 + bias  ->  4x4/4 max-pool
# ----------------------------------------------------------------------------
def _make_fused_kernel(Bblk, H1n, H2n, PH, PW, C2):
    n_even = H2n + 1           # parity-major rows: evens occupy [0, n_even)
    tap_off = (0, n_even, 1)   # scratch-row offsets of the 3 conv2 taps / image

    def kernel(a1_ref, t1_ref, b1_ref, t2_ref, b2_ref, o_ref, y1_scr):
        # ---- conv1 + bias + ELU: one fat MXU matmul (M=Bblk*H1n, K=3*W*Cin) --
        acc1 = jnp.dot(a1_ref[0], t1_ref[...],
                       preferred_element_type=jnp.float32)
        acc1 = acc1 + b1_ref[...]                       # (Bblk*H1n, W1n*C1)
        # ELU(alpha=1); exp(x)-1 vs expm1 differs by <1.2e-7 here (f32 math).
        y1 = jnp.where(acc1 > 0, acc1, jnp.exp(jnp.minimum(acc1, 0.0)) - 1.0)
        y1_scr[...] = y1.astype(jnp.bfloat16)           # rows: (img, parity-major r)

        # ---- conv2 + bias: taps are CONTIGUOUS sublane slices of the scratch,
        #      lane-concatenated into one matmul (M=Bblk*H2n, K=3*W1n*C1) -----
        cols = []
        for i in range(KH):
            parts = [y1_scr[pl.ds(b * H1n + tap_off[i], H2n), :]
                     for b in range(Bblk)]
            cols.append(parts[0] if Bblk == 1
                        else jnp.concatenate(parts, axis=0))
        a2 = jnp.concatenate(cols, axis=-1)             # (Bblk*H2n, 3*W1n*C1)
        acc2 = jnp.dot(a2, t2_ref[...],
                       preferred_element_type=jnp.float32)
        acc2 = acc2 + b2_ref[...]                       # (Bblk*H2n, W2n*C2)

        # TODO(synk): nn.Dropout(p=0.25) train-mode mask omitted (inference
        #             identity); would use pltpu.prng_seed/prng_random_bits.

        # ---- 4x4 stride-4 max pool (reshape-based, sublane reductions) ------
        zw = acc2.reshape(Bblk * H2n, PW, POOL, C2)
        mw = jnp.max(zw, axis=2)                        # (Bblk*H2n, PW, C2)
        zh = mw.reshape(Bblk * PH, POOL, PW * C2)
        mh = jnp.max(zh, axis=1)                        # (Bblk*PH, PW*C2)
        o_ref[0] = mh.reshape(1, Bblk * PH * PW * C2)   # one lane-dense row

    return kernel


# ----------------------------------------------------------------------------
# Forward pass (Net.forward equivalent); weights are pre-processed once.
# ----------------------------------------------------------------------------
@jax.jit
def net_forward(x_nchw, t1s, b1r, t2s, b2r):
    B, Cin, H, W = x_nchw.shape
    PH, PW, H1n, W1n, H2n, W2n = _geometry(H, W)
    C1 = t1s.shape[1] // W1n
    C2 = t2s.shape[1] // W2n
    K1, K2 = KH * W * Cin, KH * W1n * C1
    assert t1s.shape == (K1, W1n * C1) and t2s.shape == (K2, W2n * C2)

    # Images per grid step: fatten MXU M, but keep >= 2 grid steps when
    # possible so both v7x TensorCores get work.
    Bblk = max(1, min(8, B // 2))
    nblk = pl.cdiv(B, Bblk)
    Bpad = nblk * Bblk

    # Per-call layout plumbing (fused by XLA into one relayout copy):
    # lane-dense image, three kernel-row taps (rows 2r+i) packed along lanes,
    # rows in parity-major order.  The result IS the conv1 matmul LHS; it ships
    # only pool-covered rows, in bf16.
    xl = jnp.transpose(x_nchw, (0, 2, 3, 1)).reshape(B, H, W * Cin)
    taps = [xl[:, i: i + 2 * H1n - 1: 2, :] for i in range(KH)]  # (B,H1n,W*Cin)
    a1 = jnp.concatenate(taps, axis=-1)                          # (B,H1n,K1)
    a1 = jnp.concatenate([a1[:, 0::2, :], a1[:, 1::2, :]], axis=1)  # parity-major
    a1 = a1.astype(jnp.bfloat16)
    if Bpad != B:
        a1 = jnp.pad(a1, ((0, Bpad - B), (0, 0), (0, 0)))
    a1 = a1.reshape(nblk, Bblk * H1n, K1)

    L = Bblk * PH * PW * C2
    kernel = _make_fused_kernel(Bblk, H1n, H2n, PH, PW, C2)
    pooled = pl.pallas_call(
        kernel,
        out_shape=jax.ShapeDtypeStruct((nblk, 1, L), jnp.float32),
        grid=(nblk,),
        in_specs=[
            pl.BlockSpec((1, Bblk * H1n, K1), lambda b: (b, 0, 0)),  # conv1 LHS
            pl.BlockSpec((K1, W1n * C1), lambda b: (0, 0)),          # T1 (const)
            pl.BlockSpec((1, W1n * C1), lambda b: (0, 0)),           # b1 row
            pl.BlockSpec((K2, W2n * C2), lambda b: (0, 0)),          # T2 (const)
            pl.BlockSpec((1, W2n * C2), lambda b: (0, 0)),           # b2 row
        ],
        out_specs=pl.BlockSpec((1, 1, L), lambda b: (b, 0, 0)),
        scratch_shapes=[pltpu.VMEM((Bblk * H1n, W1n * C1), jnp.bfloat16)],
        compiler_params=pltpu.CompilerParams(
            dimension_semantics=("parallel",)),
    )(a1, t1s, b1r, t2s, b2r)

    # PyTorch flatten order of (B, C2, PH, PW): index = c*PH*PW + ph*PW + pw.
    pooled = pooled.reshape(Bpad, PH, PW, C2)[:B]
    return jnp.transpose(pooled, (0, 3, 1, 2)).reshape(B, -1)


# ----------------------------------------------------------------------------
# Pure-JAX reference (ground truth for the correctness check)
# ----------------------------------------------------------------------------
def reference_forward(x_nchw, w1, b1, w2, b2):
    dn = ('NCHW', 'OIHW', 'NCHW')
    y = lax.conv_general_dilated(x_nchw, w1, (2, 2), 'VALID',
                                 dimension_numbers=dn,
                                 precision=lax.Precision.HIGHEST)
    y = y + b1[None, :, None, None]
    y = jnp.where(y > 0, y, jnp.expm1(jnp.minimum(y, 0.0)))   # ELU
    z = lax.conv_general_dilated(y, w2, (2, 2), 'VALID',
                                 dimension_numbers=dn,
                                 precision=lax.Precision.HIGHEST)
    z = z + b2[None, :, None, None]
    p = lax.reduce_window(z, -jnp.inf, lax.max, (1, 1, 4, 4), (1, 1, 4, 4),
                          'VALID')
    return p.reshape(p.shape[0], -1)


if __name__ == "__main__":
    key = jax.random.PRNGKey(0)
    k1, k2, k3, k4, k5 = jax.random.split(key, 5)

    # Deterministic synthetic parameters (shapes from Net.__init__)
    w1 = jax.random.normal(k1, (24, 3, 3, 3), jnp.float32) * 0.10   # conv1 OIHW
    b1 = jax.random.normal(k2, (24,), jnp.float32) * 0.10
    w2 = jax.random.normal(k3, (48, 24, 3, 3), jnp.float32) * 0.05  # conv2 OIHW
    b2 = jax.random.normal(k4, (48,), jnp.float32) * 0.10

    # 32x32 input so the 4x4/4 max-pool has a valid window (7x7 pre-pool).
    x = jax.random.normal(k5, (2, 3, 32, 32), jnp.float32)

    # One-time, weight-only preprocessing (hoisted out of the forward path).
    params = jax.block_until_ready(prepare_params(w1, b1, w2, b2, 32, 32))

    out = jax.block_until_ready(net_forward(x, *params))
    ref = reference_forward(x, w1, b1, w2, b2)
    assert out.shape == ref.shape == (2, 48), (out.shape, ref.shape)
    # bf16 MXU operands (f32 accumulate) vs the f32 HIGHEST reference: expected
    # numerical (not logical) difference -> 2e-2 tolerance.
    if not jnp.allclose(out, ref, atol=2e-2, rtol=2e-2):
        err = float(jnp.max(jnp.abs(out - ref)))
        raise AssertionError(f"Pallas output does not match reference "
                             f"(max abs err {err:.3e})")

    print("KERNEL_OK")
</pallas_src>

<mosaic_0001>
module attributes {stable_mosaic.version = 11 : i64} {
  func.func @kernel(%arg0: i32, %arg1: memref<1x9x288xbf16, #tpu.memory_space<vmem>>, %arg2: memref<288x216xbf16, #tpu.memory_space<vmem>>, %arg3: memref<1x216xf32, #tpu.memory_space<vmem>>, %arg4: memref<648x192xbf16, #tpu.memory_space<vmem>>, %arg5: memref<1x192xf32, #tpu.memory_space<vmem>>, %arg6: memref<1x1x48xf32, #tpu.memory_space<vmem>>, %arg7: memref<9x216xbf16, #tpu.memory_space<vmem>>) attributes {dimension_semantics = [#tpu.dimension_semantics<parallel>], iteration_bounds = array<i64: 2>, scalar_prefetch = 0 : i64, scratch_operands = 1 : i64, tpu.core_type = #tpu.core_type<tc>, window_params = [{transform_indices = @transform_0, window_bounds = array<i64: 1, 9, 288>}, {pipeline_mode = #tpu.pipeline_mode<synchronous>, transform_indices = @transform_1, window_bounds = array<i64: 288, 216>}, {pipeline_mode = #tpu.pipeline_mode<synchronous>, transform_indices = @transform_2, window_bounds = array<i64: 1, 216>}, {pipeline_mode = #tpu.pipeline_mode<synchronous>, transform_indices = @transform_3, window_bounds = array<i64: 648, 192>}, {pipeline_mode = #tpu.pipeline_mode<synchronous>, transform_indices = @transform_4, window_bounds = array<i64: 1, 192>}, {transform_indices = @transform_5, window_bounds = array<i64: 1, 1, 48>}]} {
    %c0 = arith.constant 0 : index
    %c0_0 = arith.constant 0 : index
    %c0_1 = arith.constant 0 : index
    %0 = vector.load %arg1[%c0, %c0_0, %c0_1] : memref<1x9x288xbf16, #tpu.memory_space<vmem>>, vector<1x9x288xbf16>
    %1 = vector.shape_cast %0 : vector<1x9x288xbf16> to vector<9x288xbf16>
    %c0_2 = arith.constant 0 : index
    %c0_3 = arith.constant 0 : index
    %2 = vector.load %arg2[%c0_2, %c0_3] : memref<288x216xbf16, #tpu.memory_space<vmem>>, vector<288x216xbf16>
    %cst = arith.constant dense<0.000000e+00> : vector<9x216xf32>
    %3 = tpu.matmul %1, %2, %cst {dimension_numbers = #tpu.dot_dimension_numbers<[1], [0], [0], [1], [0, 0, 1, 1], [], []>} : vector<9x288xbf16>, vector<288x216xbf16>, vector<9x216xf32> -> vector<9x216xf32>
    %c0_4 = arith.constant 0 : index
    %c0_5 = arith.constant 0 : index
    %4 = vector.load %arg3[%c0_4, %c0_5] : memref<1x216xf32, #tpu.memory_space<vmem>>, vector<1x216xf32>
    %5 = vector.broadcast %4 : vector<1x216xf32> to vector<9x216xf32>
    %6 = arith.addf %3, %5 : vector<9x216xf32>
    %cst_6 = arith.constant 0.000000e+00 : f32
    %7 = vector.broadcast %cst_6 : f32 to vector<9x216xf32>
    %8 = arith.cmpf ogt, %6, %7 : vector<9x216xf32>
    %cst_7 = arith.constant 0.000000e+00 : f32
    %9 = vector.broadcast %cst_7 : f32 to vector<9x216xf32>
    %10 = arith.minimumf %6, %9 : vector<9x216xf32>
    %11 = math.exp %10 : vector<9x216xf32>
    %cst_8 = arith.constant 1.000000e+00 : f32
    %12 = vector.broadcast %cst_8 : f32 to vector<9x216xf32>
    %13 = arith.subf %11, %12 : vector<9x216xf32>
    %14 = arith.select %8, %6, %13 : vector<9x216xi1>, vector<9x216xf32>
    %15 = arith.truncf %14 : vector<9x216xf32> to vector<9x216xbf16>
    %c0_9 = arith.constant 0 : index
    %c0_10 = arith.constant 0 : index
    %16 = vector.load %arg7[%c0_9, %c0_10] : memref<9x216xbf16, #tpu.memory_space<vmem>>, vector<9x216xbf16>
    tpu.vector_store %arg7[%c0_9, %c0_10], %15 {strides = array<i32>} : memref<9x216xbf16, #tpu.memory_space<vmem>>, vector<9x216xbf16>,
    %c0_11 = arith.constant 0 : index
    %c0_12 = arith.constant 0 : index
    %17 = vector.load %arg7[%c0_11, %c0_12] : memref<9x216xbf16, #tpu.memory_space<vmem>>, vector<4x216xbf16>
    %c5 = arith.constant 5 : index
    %c0_13 = arith.constant 0 : index
    %18 = vector.load %arg7[%c5, %c0_13] : memref<9x216xbf16, #tpu.memory_space<vmem>>, vector<4x216xbf16>
    %c1 = arith.constant 1 : index
    %c0_14 = arith.constant 0 : index
    %19 = vector.load %arg7[%c1, %c0_14] : memref<9x216xbf16, #tpu.memory_space<vmem>>, vector<4x216xbf16>
    %20 = tpu.concatenate %17, %18, %19 in 1 : vector<4x216xbf16>, vector<4x216xbf16>, vector<4x216xbf16> -> vector<4x648xbf16>
    %c0_15 = arith.constant 0 : index
    %c0_16 = arith.constant 0 : index
    %21 = vector.load %arg4[%c0_15, %c0_16] : memref<648x192xbf16, #tpu.memory_space<vmem>>, vector<648x192xbf16>
    %cst_17 = arith.constant dense<0.000000e+00> : vector<4x192xf32>
    %22 = tpu.matmul %20, %21, %cst_17 {dimension_numbers = #tpu.dot_dimension_numbers<[1], [0], [0], [1], [0, 0, 1, 1], [], []>} : vector<4x648xbf16>, vector<648x192xbf16>, vector<4x192xf32> -> vector<4x192xf32>
    %c0_18 = arith.constant 0 : index
    %c0_19 = arith.constant 0 : index
    %23 = vector.load %arg5[%c0_18, %c0_19] : memref<1x192xf32, #tpu.memory_space<vmem>>, vector<1x192xf32>
    %24 = vector.broadcast %23 : vector<1x192xf32> to vector<4x192xf32>
    %25 = arith.addf %22, %24 : vector<4x192xf32>
    %26 = vector.shape_cast %25 : vector<4x192xf32> to vector<4x1x4x48xf32>
    %cst_20 = arith.constant dense<0xFF800000> : vector<4x1x48xf32>
    %27 = vector.multi_reduction <maximumf>, %26, %cst_20 [2] : vector<4x1x4x48xf32> to vector<4x1x48xf32>
    %28 = vector.shape_cast %27 : vector<4x1x48xf32> to vector<1x4x48xf32>
    %cst_21 = arith.constant dense<0xFF800000> : vector<1x48xf32>
    %29 = vector.multi_reduction <maximumf>, %28, %cst_21 [1] : vector<1x4x48xf32> to vector<1x48xf32>
    %c0_22 = arith.constant 0 : index
    %c0_23 = arith.constant 0 : index
    %c0_24 = arith.constant 0 : index
    %30 = vector.load %arg6[%c0_22, %c0_23, %c0_24] : memref<1x1x48xf32, #tpu.memory_space<vmem>>, vector<1x1x48xf32>
    %31 = vector.shape_cast %30 : vector<1x1x48xf32> to vector<1x48xf32>
    %32 = vector.shape_cast %29 : vector<1x48xf32> to vector<1x1x48xf32>
    tpu.vector_store %arg6[%c0_22, %c0_23, %c0_24], %32 {strides = array<i32>} : memref<1x1x48xf32, #tpu.memory_space<vmem>>, vector<1x1x48xf32>,
    return
  }
  func.func @transform_0(%arg0: i32) -> (i32, i32, i32) {
    %c0_i32 = arith.constant 0 : i32
    %c0_i32_0 = arith.constant 0 : i32
    %c0_i32_1 = arith.constant 0 : i32
    return %arg0, %c0_i32, %c0_i32_0 : i32, i32, i32
  }
  func.func @transform_1(%arg0: i32) -> (i32, i32) {
    %c0_i32 = arith.constant 0 : i32
    %c0_i32_0 = arith.constant 0 : i32
    %c0_i32_1 = arith.constant 0 : i32
    return %c0_i32, %c0_i32_0 : i32, i32
  }
  func.func @transform_2(%arg0: i32) -> (i32, i32) {
    %c0_i32 = arith.constant 0 : i32
    %c0_i32_0 = arith.constant 0 : i32
    %c0_i32_1 = arith.constant 0 : i32
    return %c0_i32, %c0_i32_0 : i32, i32
  }
  func.func @transform_3(%arg0: i32) -> (i32, i32) {
    %c0_i32 = arith.constant 0 : i32
    %c0_i32_0 = arith.constant 0 : i32
    %c0_i32_1 = arith.constant 0 : i32
    return %c0_i32, %c0_i32_0 : i32, i32
  }
  func.func @transform_4(%arg0: i32) -> (i32, i32) {
    %c0_i32 = arith.constant 0 : i32
    %c0_i32_0 = arith.constant 0 : i32
    %c0_i32_1 = arith.constant 0 : i32
    return %c0_i32, %c0_i32_0 : i32, i32
  }
  func.func @transform_5(%arg0: i32) -> (i32, i32, i32) {
    %c0_i32 = arith.constant 0 : i32
    %c0_i32_0 = arith.constant 0 : i32
    %c0_i32_1 = arith.constant 0 : i32
    return %arg0, %c0_i32, %c0_i32_0 : i32, i32, i32
  }
}

</mosaic_0001>

<llo_original>
// kernel: net_forward.1
$region0: #{net_forward.1}
  #allocation0 [shape = 'u32[]', space=smem, size = 0x4, offset = 0x4, fixed_abs, tag = 'smem constant byte address 0x4 - core index']
  #allocation1 [shape = 'u32[144,128]{1,0:T(1,128)}', space=vmem, size = 0x12000, scoped, tag = 'internal scratch']
  #allocation2 [shape = 'bf16[9,216]{1,0:T(8,128)(2,1)}', space=vmem, size = 0x2000, scoped, tag = 'scratch operand']
  %s0 = inlined_call_operand.vmem [shape: bf16[2,9,288], index: 0, kind: input, shape index: {}]
  %s1 = inlined_call_operand.vmem [shape: bf16[288,216], index: 1, kind: input, shape index: {}]
  %s2 = inlined_call_operand.vmem [shape: f32[1,216], index: 2, kind: input, shape index: {}]
  %s3 = inlined_call_operand.vmem [shape: bf16[648,192], index: 3, kind: input, shape index: {}]
  %s4 = inlined_call_operand.vmem [shape: f32[1,192], index: 4, kind: input, shape index: {}]
  %s5 = inlined_call_operand.hbm [shape: f32[2,1,48], index: 5, kind: output, shape index: {}]
  %s6 = sld [smem:[#allocation0]]
  $region53: #{net_forward.1} parent=0
    _
  %s8 = ssub.s32 1, %s6
  %s9 = scalar_select 0, %s8, %s6
  $region1: #{net_forward.1} parent=0
    #allocation3 [shape = 'u8[1024]{0}', space=vmem, size = 0x400, scoped, tag = 'output window, operand 0']
    #allocation4 [shape = 's32[2]{0}', space=sflag, size = 0x8, scoped, tag = 'scoped memory for net_forward.1']
    %10 = vsyncpa [#allocation4], 0
    %s11 = scalar_lea.sflag [#allocation4], 1
    %12 = vsyncpa %s11, 0
    loop: start=0, step=1, limit=4
    $region2: #{net_forward.1} parent=1 // loop_pre_header
      _
    $region3: #{net_forward.1} parent=1 // loop_header
      %s14 = sphi 0, %s18
      %p15 = scmp.ge.s32.totalorder %s14, 4
      %s24 = sphi 0, %s26
      %s27 = sphi 0, %s24
      %s28 = sphi 0, %s27
      %s44 = sphi 0, %s28
      %s48 = sphi 0, %s48
      %s50 = sphi 0, %s48
      %s51 = sphi 0, %s50
      %s65 = sphi 0, %s51
      %s69 = sphi 0, %s69
      %s71 = sphi 0, %s69
      %s72 = sphi 0, %s71
      %s86 = sphi 0, %s72
      %s90 = sphi 0, %s90
      %s92 = sphi 0, %s90
      %s93 = sphi 0, %s92
      %s107 = sphi 0, %s93
      %s111 = sphi 0, %s111
      %s113 = sphi 0, %s111
      %s114 = sphi 0, %s113
      %s128 = sphi 0, %s114
      %s134 = sphi 0, %s136
      %s137 = sphi 0, %s134
      %s138 = sphi 0, %s137
      %s154 = sphi 0, %s138
    $region4: #{net_forward.1} parent=1 // loop_header_branch
      %17 = sbr.rel (%p15) target = $region8
    $region5: #{net_forward.1} parent=1 // loop_body
      %s19 = ssub.s32 %s14, 1
      %s20 = ssub.s32 %s14, 2
      %s21 = sadd.s32 %s14, 1
      %s22 = ssub.s32 %s14, %s21
      %p23 = scmp.eq.s32.totalorder %s22, 0
      %s25 = sadd.s32 %s24, 1
      %s26 = scalar_select %p23, %s24, %s25
      %p29 = pneg %p23
      %p30 = scmp.eq.s32.totalorder %s14, 1
      %p31 = por %p29, %p30
      %p32 = scmp.ne.s32.totalorder %s24, %s27
      %p33 = scmp.eq.s32.totalorder %s14, 0
      %p34 = por %p32, %p33
      %p35 = scmp.ne.s32.totalorder %s24, %s27
      %p36 = scmp.eq.s32.totalorder %s19, 1
      %p37 = por %p35, %p36
      %p38 = scmp.ne.s32.totalorder %s27, %s28
      %p39 = scmp.eq.s32.totalorder %s19, 0
      %p40 = por %p38, %p39
      %p41 = scmp.ne.s32.totalorder %s27, %s28
      %p42 = scmp.eq.s32.totalorder %s20, 1
      %p43 = por %p41, %p42
      %p45 = scmp.ne.s32.totalorder %s28, %s44
      %p46 = scmp.eq.s32.totalorder %s20, 0
      %p47 = por %p45, %p46
      %s49 = sadd.s32 %s48, 1
      %p52 = scmp.eq.s32.totalorder %s14, 1
      %p53 = scmp.ne.s32.totalorder %s48, %s50
      %p54 = scmp.eq.s32.totalorder %s14, 0
      %p55 = por %p53, %p54
      %p56 = scmp.ne.s32.totalorder %s48, %s50
      %p57 = scmp.eq.s32.totalorder %s19, 1
      %p58 = por %p56, %p57
      %p59 = scmp.ne.s32.totalorder %s50, %s51
      %p60 = scmp.eq.s32.totalorder %s19, 0
      %p61 = por %p59, %p60
      %p62 = scmp.ne.s32.totalorder %s50, %s51
      %p63 = scmp.eq.s32.totalorder %s20, 1
      %p64 = por %p62, %p63
      %p66 = scmp.ne.s32.totalorder %s51, %s65
      %p67 = scmp.eq.s32.totalorder %s20, 0
      %p68 = por %p66, %p67
      %s70 = sadd.s32 %s69, 1
      %p73 = scmp.eq.s32.totalorder %s14, 1
      %p74 = scmp.ne.s32.totalorder %s69, %s71
      %p75 = scmp.eq.s32.totalorder %s14, 0
      %p76 = por %p74, %p75
      %p77 = scmp.ne.s32.totalorder %s69, %s71
      %p78 = scmp.eq.s32.totalorder %s19, 1
      %p79 = por %p77, %p78
      %p80 = scmp.ne.s32.totalorder %s71, %s72
      %p81 = scmp.eq.s32.totalorder %s19, 0
      %p82 = por %p80, %p81
      %p83 = scmp.ne.s32.totalorder %s71, %s72
      %p84 = scmp.eq.s32.totalorder %s20, 1
      %p85 = por %p83, %p84
      %p87 = scmp.ne.s32.totalorder %s72, %s86
      %p88 = scmp.eq.s32.totalorder %s20, 0
      %p89 = por %p87, %p88
      %s91 = sadd.s32 %s90, 1
      %p94 = scmp.eq.s32.totalorder %s14, 1
      %p95 = scmp.ne.s32.totalorder %s90, %s92
      %p96 = scmp.eq.s32.totalorder %s14, 0
      %p97 = por %p95, %p96
      %p98 = scmp.ne.s32.totalorder %s90, %s92
      %p99 = scmp.eq.s32.totalorder %s19, 1
      %p100 = por %p98, %p99
      %p101 = scmp.ne.s32.totalorder %s92, %s93
      %p102 = scmp.eq.s32.totalorder %s19, 0
      %p103 = por %p101, %p102
      %p104 = scmp.ne.s32.totalorder %s92, %s93
      %p105 = scmp.eq.s32.totalorder %s20, 1
      %p106 = por %p104, %p105
      %p108 = scmp.ne.s32.totalorder %s93, %s107
      %p109 = scmp.eq.s32.totalorder %s20, 0
      %p110 = por %p108, %p109
      %s112 = sadd.s32 %s111, 1
      %p115 = scmp.eq.s32.totalorder %s14, 1
      %p116 = scmp.ne.s32.totalorder %s111, %s113
      %p117 = scmp.eq.s32.totalorder %s14, 0
      %p118 = por %p116, %p117
      %p119 = scmp.ne.s32.totalorder %s111, %s113
      %p120 = scmp.eq.s32.totalorder %s19, 1
      %p121 = por %p119, %p120
      %p122 = scmp.ne.s32.totalorder %s113, %s114
      %p123 = scmp.eq.s32.totalorder %s19, 0
      %p124 = por %p122, %p123
      %p125 = scmp.ne.s32.totalorder %s113, %s114
      %p126 = scmp.eq.s32.totalorder %s20, 1
      %p127 = por %p125, %p126
      %p129 = scmp.ne.s32.totalorder %s114, %s128
      %p130 = scmp.eq.s32.totalorder %s20, 0
      %p131 = por %p129, %p130
      %s132 = ssub.s32 %s14, %s21
      %p133 = scmp.eq.s32.totalorder %s132, 0
      %s135 = sadd.s32 %s134, 1
      %s136 = scalar_select %p133, %s134, %s135
      %p139 = pneg %p133
      %p140 = scmp.eq.s32.totalorder %s14, 1
      %p141 = por %p139, %p140
      %p142 = scmp.ne.s32.totalorder %s134, %s137
      %p143 = scmp.eq.s32.totalorder %s14, 0
      %p144 = por %p142, %p143
      %p145 = scmp.ne.s32.totalorder %s134, %s137
      %p146 = scmp.eq.s32.totalorder %s19, 1
      %p147 = por %p145, %p146
      %p148 = scmp.ne.s32.totalorder %s137, %s138
      %p149 = scmp.eq.s32.totalorder %s19, 0
      %p150 = por %p148, %p149
      %p151 = scmp.ne.s32.totalorder %s137, %s138
      %p152 = scmp.eq.s32.totalorder %s20, 1
      %p153 = por %p151, %p152
      %p155 = scmp.ne.s32.totalorder %s138, %s154
      %p156 = scmp.eq.s32.totalorder %s20, 0
      %p157 = por %p155, %p156
      %p158 = scmp.le.s32.totalorder 1, %s14
      %p159 = scmp.lt.s32.totalorder %s14, 3
      %p160 = pnand %p158, %p159
      %p161 = pneg %p160
      // Predicated region
      $region9: #{net_forward.1} parent=5 // pred_check
        _
      $region10: #{net_forward.1} parent=5 // pred_check_branch
        %163 = sbr.rel (%p160) target = $region12
      $region11: #{net_forward.1} parent=5 // pred_region
        %s164 = ssub.s32 %s14, 1
        // Predicated region
        $region13: #{net_forward.1} parent=11 // pred_check
          %p165 = pneg %p61
        $region14: #{net_forward.1} parent=11 // pred_check_branch
          %167 = sbr.rel (%p165) target = $region16
        $region15: #{net_forward.1} parent=11 // pred_region
          _
        $region16: #{net_forward.1} parent=11 // pred_fallthru
          _
        // Predicated region
        $region17: #{net_forward.1} parent=11 // pred_check
          %p168 = pneg %p82
        $region18: #{net_forward.1} parent=11 // pred_check_branch
          %170 = sbr.rel (%p168) target = $region20
        $region19: #{net_forward.1} parent=11 // pred_region
          _
        $region20: #{net_forward.1} parent=11 // pred_fallthru
          _
        // Predicated region
        $region21: #{net_forward.1} parent=11 // pred_check
          %p171 = pneg %p103
        $region22: #{net_forward.1} parent=11 // pred_check_branch
          %173 = sbr.rel (%p171) target = $region24
        $region23: #{net_forward.1} parent=11 // pred_region
          _
        $region24: #{net_forward.1} parent=11 // pred_fallthru
          _
        // Predicated region
        $region25: #{net_forward.1} parent=11 // pred_check
          %p174 = pneg %p124
        $region26: #{net_forward.1} parent=11 // pred_check_branch
          %176 = sbr.rel (%p174) target = $region28
        $region27: #{net_forward.1} parent=11 // pred_region
          _
        $region28: #{net_forward.1} parent=11 // pred_fallthru
          _
      $region12: #{net_forward.1} parent=5 // pred_fallthru
        _
      %p177 = scmp.lt.s32.totalorder %s14, 2
      // Predicated region
      $region29: #{net_forward.1} parent=5 // pred_check
        %p178 = pneg %p177
      $region30: #{net_forward.1} parent=5 // pred_check_branch
        %180 = sbr.rel (%p178) target = $region32
      $region31: #{net_forward.1} parent=5 // pred_region
        // Predicated region
        $region33: #{net_forward.1} parent=31 // pred_check
          %p181 = pneg %p34
        $region34: #{net_forward.1} parent=31 // pred_check_branch
          %183 = sbr.rel (%p181) target = $region36
        $region35: #{net_forward.1} parent=31 // pred_region
          %p184 = scmp.lt.s32.totalorder %s14, 1
          %s185 = scalar_select %p184, %s14, 1
          %s186 = smul.addr %s185, 6
          %s187 = smul.addr %s186, 4
          %s188 = scalar_lea.vmem %s0, %s187
        $region36: #{net_forward.1} parent=31 // pred_fallthru
          _
      $region32: #{net_forward.1} parent=5 // pred_fallthru
        _
      %p189 = scmp.le.s32.totalorder 1, %s14
      %p190 = scmp.lt.s32.totalorder %s14, 3
      %p191 = pnand %p189, %p190
      %p192 = pneg %p191
      // Predicated region
      $region37: #{net_forward.1} parent=5 // pred_check
        _
      $region38: #{net_forward.1} parent=5 // pred_check_branch
        %194 = sbr.rel (%p191) target = $region40
      $region39: #{net_forward.1} parent=5 // pred_region
        %s195 = ssub.s32 %s14, 1
        %p196 = scmp.lt.s32.totalorder %s19, 1
        %s197 = scalar_select %p196, %s19, 1
        %s198 = smul.addr %s197, 6
        %s199 = smul.addr %s198, 4
        %s200 = scalar_lea.vmem %s0, %s199
        %p201 = pneg %p40
        %p202 = pneg %p37
        %p203 = pneg %p61
        %p204 = pneg %p58
        %p205 = pneg %p82
        %p206 = pneg %p79
        %p207 = pneg %p103
        %p208 = pneg %p100
        %p209 = pneg %p124
        %p210 = pneg %p121
        %p211 = pneg %p150
        %p212 = pneg %p147
        %s213 = sand.u32 %s137, 1
        %s214 = scalar_lea.sflag [#allocation4], %s213
        %s215 = sand.u32 %s137, 1
        %s216 = scalar_lea.vmem [#allocation3], %s215
        %p217 = scmp.lt.s32.totalorder %s19, 1
        %s218 = scalar_select %p217, %s19, 1
        %s219 = smul.addr %s218, 6
        %s220 = smul.addr %s219, 4
        %s221 = scalar_lea.vmem %s0, %s220
        %v223 = vld [vmem:[%s221] sm:$0xff]
        %v224 = vld [vmem:[%s221 + $0x8] sm:$0xf]
        %v225 = vld [vmem:[%s221 + $0xc] sm:$0x11]
        %v226 = vld [vmem:[%s221 + $0x14] sm:$0x1]
        %v227 = vld [vmem:[%s1] sm:$0xff]
        %v228 = vld [vmem:[%s1 + $0x8] sm:$0xff]
        %v229 = vld [vmem:[%s1 + $0x10] sm:$0xff]
        %v230 = vld [vmem:[%s1 + $0x18] sm:$0xff]
        %v231 = vld [vmem:[%s1 + $0x20] sm:$0xff]
        %v232 = vld [vmem:[%s1 + $0x28] sm:$0xff]
        %v233 = vld [vmem:[%s1 + $0x30] sm:$0xff]
        %v234 = vld [vmem:[%s1 + $0x38] sm:$0xff]
        %v235 = vld [vmem:[%s1 + $0x40] sm:$0xff]
        %v236 = vld [vmem:[%s1 + $0x48] sm:$0xff]
        %v237 = vld [vmem:[%s1 + $0x50] sm:$0xff]
        %v238 = vld [vmem:[%s1 + $0x58] sm:$0xff]
        %v239 = vld [vmem:[%s1 + $0x60] sm:$0xff]
        %v240 = vld [vmem:[%s1 + $0x68] sm:$0xff]
        %v241 = vld [vmem:[%s1 + $0x70] sm:$0xff]
        %v242 = vld [vmem:[%s1 + $0x78] sm:$0xff]
        %v243 = vld [vmem:[%s1 + $0x80] sm:$0xff]
        %v244 = vld [vmem:[%s1 + $0x88] sm:$0xff]
        %v245 = vld [vmem:[%s1 + $0x90] sm:$0xff]
        %v246 = vld [vmem:[%s1 + $0x98] sm:$0xff]
        %v247 = vld [vmem:[%s1 + $0xa0] sm:$0xff]
        %v248 = vld [vmem:[%s1 + $0xa8] sm:$0xff]
        %v249 = vld [vmem:[%s1 + $0xb0] sm:$0xff]
        %v250 = vld [vmem:[%s1 + $0xb8] sm:$0xff]
        %v251 = vld [vmem:[%s1 + $0xc0] sm:$0xff]
        %v252 = vld [vmem:[%s1 + $0xc8] sm:$0xff]
        %v253 = vld [vmem:[%s1 + $0xd0] sm:$0xff]
        %v254 = vld [vmem:[%s1 + $0xd8] sm:$0xff]
        %v255 = vld [vmem:[%s1 + $0xe0] sm:$0xff]
        %v256 = vld [vmem:[%s1 + $0xe8] sm:$0xff]
        %v257 = vld [vmem:[%s1 + $0xf0] sm:$0xff]
        %v258 = vld [vmem:[%s1 + $0xf8] sm:$0xff]
        %v259 = vld [vmem:[%s1 + $0x100] sm:$0xff]
        %v260 = vld [vmem:[%s1 + $0x108] sm:$0xff]
        %v261 = vld [vmem:[%s1 + $0x110] sm:$0xff]
        %v262 = vld [vmem:[%s1 + $0x118] sm:$0xff]
        %v263 = vld [vmem:[%s2] sm:$0x3]
        %v265 = vlaneseq
        %v266 = vshrl.u32 %v265, 7
        %v267 = vsub.s32 0, %v266
        %v268 = vrot.slane %v263, %v267
        %v269 = vlaneseq
        %v270 = vshrl.u32 %v269, 7
        %v271 = vsub.s32 1, %v270
        %v272 = vrot.slane %v263, %v271
        %v279 = vunpack.c.l.b16 %v223
        %v280 = vunpack.c.h.b16 %v223
        %v281 = vunpack.c.l.b16 %v224
        %v282 = vunpack.c.l.b16 %v225
        %v283 = vunpack.c.h.b16 %v225
        %v284 = vunpack.c.l.b16 %v226
        %v285 = vpack.c.b16 %v282, %v279
        %v286 = vpack.c.b16 %v283, %v280
        %v287 = vpack.c.b16 %v284, %v281
        %v326 = vunpack.c.l.b16 %v227
        %v327 = vunpack.c.h.b16 %v227
        %v328 = vunpack.c.l.b16 %v228
        %v329 = vunpack.c.h.b16 %v228
        %v330 = vunpack.c.l.b16 %v229
        %v331 = vunpack.c.h.b16 %v229
        %v332 = vunpack.c.l.b16 %v230
        %v333 = vunpack.c.h.b16 %v230
        %v334 = vunpack.c.l.b16 %v231
        %v335 = vunpack.c.h.b16 %v231
        %v336 = vunpack.c.l.b16 %v232
        %v337 = vunpack.c.h.b16 %v232
        %v338 = vunpack.c.l.b16 %v233
        %v339 = vunpack.c.h.b16 %v233
        %v340 = vunpack.c.l.b16 %v234
        %v341 = vunpack.c.h.b16 %v234
        %v342 = vunpack.c.l.b16 %v235
        %v343 = vunpack.c.h.b16 %v235
        %v344 = vunpack.c.l.b16 %v236
        %v345 = vunpack.c.h.b16 %v236
        %v346 = vunpack.c.l.b16 %v237
        %v347 = vunpack.c.h.b16 %v237
        %v348 = vunpack.c.l.b16 %v238
        %v349 = vunpack.c.h.b16 %v238
        %v350 = vunpack.c.l.b16 %v239
        %v351 = vunpack.c.h.b16 %v239
        %v352 = vunpack.c.l.b16 %v240
        %v353 = vunpack.c.h.b16 %v240
        %v354 = vunpack.c.l.b16 %v241
        %v355 = vunpack.c.h.b16 %v241
        %v356 = vunpack.c.l.b16 %v242
        %v357 = vunpack.c.h.b16 %v242
        %v358 = vunpack.c.l.b16 %v243
        %v359 = vunpack.c.h.b16 %v243
        %v360 = vunpack.c.l.b16 %v244
        %v361 = vunpack.c.h.b16 %v244
        %v362 = vunpack.c.l.b16 %v245
        %v363 = vunpack.c.h.b16 %v245
        %v364 = vunpack.c.l.b16 %v246
        %v365 = vunpack.c.h.b16 %v246
        %v366 = vunpack.c.l.b16 %v247
        %v367 = vunpack.c.h.b16 %v247
        %v368 = vunpack.c.l.b16 %v248
        %v369 = vunpack.c.h.b16 %v248
        %v370 = vunpack.c.l.b16 %v249
        %v371 = vunpack.c.h.b16 %v249
        %v372 = vunpack.c.l.b16 %v250
        %v373 = vunpack.c.h.b16 %v250
        %v374 = vunpack.c.l.b16 %v251
        %v375 = vunpack.c.h.b16 %v251
        %v376 = vunpack.c.l.b16 %v252
        %v377 = vunpack.c.h.b16 %v252
        %v378 = vunpack.c.l.b16 %v253
        %v379 = vunpack.c.h.b16 %v253
        %v380 = vunpack.c.l.b16 %v254
        %v381 = vunpack.c.h.b16 %v254
        %v382 = vunpack.c.l.b16 %v255
        %v383 = vunpack.c.h.b16 %v255
        %v384 = vunpack.c.l.b16 %v256
        %v385 = vunpack.c.h.b16 %v256
        %v386 = vunpack.c.l.b16 %v257
        %v387 = vunpack.c.h.b16 %v257
        %v388 = vunpack.c.l.b16 %v258
        %v389 = vunpack.c.h.b16 %v258
        %v390 = vunpack.c.l.b16 %v259
        %v391 = vunpack.c.h.b16 %v259
        %v392 = vunpack.c.l.b16 %v260
        %v393 = vunpack.c.h.b16 %v260
        %v394 = vunpack.c.l.b16 %v261
        %v395 = vunpack.c.h.b16 %v261
        %v396 = vunpack.c.l.b16 %v262
        %v397 = vunpack.c.h.b16 %v262
        %v398 = vpack.c.b16 %v328, %v326
        %v399 = vpack.c.b16 %v329, %v327
        %v400 = vpack.c.b16 %v332, %v330
        %v401 = vpack.c.b16 %v333, %v331
        %v402 = vpack.c.b16 %v336, %v334
        %v403 = vpack.c.b16 %v337, %v335
        %v404 = vpack.c.b16 %v340, %v338
        %v405 = vpack.c.b16 %v341, %v339
        %v406 = vpack.c.b16 %v344, %v342
        %v407 = vpack.c.b16 %v345, %v343
        %v408 = vpack.c.b16 %v348, %v346
        %v409 = vpack.c.b16 %v349, %v347
        %v410 = vpack.c.b16 %v352, %v350
        %v411 = vpack.c.b16 %v353, %v351
        %v412 = vpack.c.b16 %v356, %v354
        %v413 = vpack.c.b16 %v357, %v355
        %v414 = vpack.c.b16 %v360, %v358
        %v415 = vpack.c.b16 %v361, %v359
        %v416 = vpack.c.b16 %v364, %v362
        %v417 = vpack.c.b16 %v365, %v363
        %v418 = vpack.c.b16 %v368, %v366
        %v419 = vpack.c.b16 %v369, %v367
        %v420 = vpack.c.b16 %v372, %v370
        %v421 = vpack.c.b16 %v373, %v371
        %v422 = vpack.c.b16 %v376, %v374
        %v423 = vpack.c.b16 %v377, %v375
        %v424 = vpack.c.b16 %v380, %v378
        %v425 = vpack.c.b16 %v381, %v379
        %v426 = vpack.c.b16 %v384, %v382
        %v427 = vpack.c.b16 %v385, %v383
        %v428 = vpack.c.b16 %v388, %v386
        %v429 = vpack.c.b16 %v389, %v387
        %v430 = vpack.c.b16 %v392, %v390
        %v431 = vpack.c.b16 %v393, %v391
        %v432 = vpack.c.b16 %v396, %v394
        %v433 = vpack.c.b16 %v397, %v395
        %vm470 = vcmask 261120
        %v472 = vsel %vm470, %v287, 0
        %474 = vmatprep.subr.bf16.mxu0 %v413
        %475 = vmatpush1.bf16.msra.mxu0 %v412
        %476 = vmatprep.subr.bf16.mxu0 %v411
        %477 = vmatpush1.bf16.msra.mxu0 %v410
        %478 = vmatprep.subr.bf16.mxu0 %v409
        %479 = vmatpush1.bf16.msra.mxu0 %v408
        %480 = vmatprep.subr.bf16.mxu0 %v407
        %481 = vmatpush1.bf16.msra.mxu0 %v406
        %482 = vmatprep.subr.bf16.mxu0 %v405
        %483 = vmatpush1.bf16.msra.mxu0 %v404
        %484 = vmatprep.subr.bf16.mxu0 %v403
        %485 = vmatpush1.bf16.msra.mxu0 %v402
        %486 = vmatprep.subr.bf16.mxu0 %v401
        %487 = vmatpush1.bf16.msra.mxu0 %v400
        %488 = vmatprep.subr.bf16.mxu0 %v399
        %489 = vmatpush1.bf16.msra.mxu0 %v398
        %490 = vmatprep.subr.bf16.mxu0 %v429
        %491 = vmatpush2.bf16.msra.mxu0 %v428
        %492 = vmatprep.subr.bf16.mxu0 %v427
        %493 = vmatpush2.bf16.msra.mxu0 %v426
        %494 = vmatprep.subr.bf16.mxu0 %v425
        %495 = vmatpush2.bf16.msra.mxu0 %v424
        %496 = vmatprep.subr.bf16.mxu0 %v423
        %497 = vmatpush2.bf16.msra.mxu0 %v422
        %498 = vmatprep.subr.bf16.mxu0 %v421
        %499 = vmatpush2.bf16.msra.mxu0 %v420
        %500 = vmatprep.subr.bf16.mxu0 %v419
        %501 = vmatpush2.bf16.msra.mxu0 %v418
        %502 = vmatprep.subr.bf16.mxu0 %v417
        %503 = vmatpush2.bf16.msra.mxu0 %v416
        %504 = vmatprep.subr.bf16.mxu0 %v415
        %505 = vmatpush2.bf16.msra.mxu0 %v414
        %506 = vmatprep.mubr.bf16.mxu0 %v286
        %507 = vmatmul.mubr.bf16.gmra.mxu0 %v285
        %v508 = vpop.f32.mrf.mxu0
        %v509 = vadd.f32 %v268, %v508
        %v510 = vpop.f32.mrf.mxu0
        %v511 = vadd.f32 %v272, %v510
        %v512 = vpop.f32.mrf.mxu0
        %v513 = vadd.f32 %v268, %v512
        %v514 = vpop.f32.mrf.mxu0
        %v515 = vadd.f32 %v272, %v514
        %516 = vdwg.mxu0
        %517 = vmatprep.subr.bf16.mxu0 0
        %518 = vmatpush1.bf16.msra.mxu0 0
        %519 = vmatprep.subr.bf16.mxu0 0
        %520 = vmatpush1.bf16.msra.mxu0 0
        %521 = vmatprep.subr.bf16.mxu0 0
        %522 = vmatpush1.bf16.msra.mxu0 0
        %523 = vmatprep.subr.bf16.mxu0 0
        %524 = vmatpush1.bf16.msra.mxu0 0
        %525 = vmatprep.subr.bf16.mxu0 0
        %526 = vmatpush1.bf16.msra.mxu0 0
        %527 = vmatprep.subr.bf16.mxu0 0
        %528 = vmatpush1.bf16.msra.mxu0 0
        %529 = vmatprep.subr.bf16.mxu0 %v433
        %530 = vmatpush1.bf16.msra.mxu0 %v432
        %531 = vmatprep.subr.bf16.mxu0 %v431
        %532 = vmatpush1.bf16.msra.mxu0 %v430
        %533 = vmatprep.subr.bf16.mxu0 0
        %534 = vmatpush2.bf16.msra.mxu0 0
        %535 = vmatprep.subr.bf16.mxu0 0
        %536 = vmatpush2.bf16.msra.mxu0 0
        %537 = vmatprep.subr.bf16.mxu0 0
        %538 = vmatpush2.bf16.msra.mxu0 0
        %539 = vmatprep.subr.bf16.mxu0 0
        %540 = vmatpush2.bf16.msra.mxu0 0
        %541 = vmatprep.subr.bf16.mxu0 0
        %542 = vmatpush2.bf16.msra.mxu0 0
        %543 = vmatprep.subr.bf16.mxu0 0
        %544 = vmatpush2.bf16.msra.mxu0 0
        %545 = vmatprep.subr.bf16.mxu0 0
        %546 = vmatpush2.bf16.msra.mxu0 0
        %547 = vmatprep.subr.bf16.mxu0 0
        %548 = vmatpush2.bf16.msra.mxu0 0
        %549 = vmatprep.mubr.bf16.mxu0 0
        %550 = vmatmul.mubr.bf16.gmra.mxu0 %v472
        %v551 = vpop.f32.mrf.mxu0
        %v552 = vadd.f32 %v509, %v551
        %v553 = vpop.f32.mrf.mxu0
        %v554 = vadd.f32 %v511, %v553
        %v555 = vpop.f32.mrf.mxu0
        %v556 = vadd.f32 %v513, %v555
        %v557 = vpop.f32.mrf.mxu0
        %v558 = vadd.f32 %v515, %v557
        %559 = vdwg.mxu0
        %vm560 = vcmp.gt.f32.partialorder %v552, 0.0
        %vm561 = vcmp.gt.f32.partialorder %v554, 0.0
        %vm562 = vcmp.gt.f32.partialorder %v556, 0.0
        %vm563 = vcmp.gt.f32.partialorder %v558, 0.0
        %v564 = vmin.f32 %v552, 0.0
        %v565 = vmin.f32 %v554, 0.0
        %v566 = vmin.f32 %v556, 0.0
        %v567 = vmin.f32 %v558, 0.0
        %v568 = vmul.f32 %v564, 1.442695
        %v569 = vpow.pop %v568
        %v570 = vmul.f32 %v565, 1.442695
        %v571 = vpow.pop %v570
        %v572 = vmul.f32 %v566, 1.442695
        %v573 = vpow.pop %v572
        %v574 = vmul.f32 %v567, 1.442695
        %v575 = vpow.pop %v574
        %v576 = vsub.f32 %v569, 1.0
        %v577 = vsub.f32 %v571, 1.0
        %v578 = vsub.f32 %v573, 1.0
        %v579 = vsub.f32 %v575, 1.0
        %v580 = vsel %vm560, %v552, %v576
        %v581 = vsel %vm561, %v554, %v577
        %v582 = vsel %vm562, %v556, %v578
        %v583 = vsel %vm563, %v558, %v579
        %v584 = vpack.c.bf16 %v582, %v580
        %v585 = vpack.c.bf16 %v583, %v581
        %v588 = vunpack.c.l.b16 %v584
        %v589 = vunpack.c.l.b16 %v585
        %v590 = vunpack.c.h.b16 %v584
        %v591 = vunpack.c.h.b16 %v585
        %v592 = vpack.c.b16 %v589, %v588
        %v593 = vpack.c.b16 %v591, %v590
        %vm596 = vcmask 1043456
        %vm597 = vcmask 719876
        %vm598 = vmor %vm597, %vm596
        %599 = vst.msk [vmem:[#allocation2] sm:$0xff] %vm598, %v592
        %vm600 = vcmask 1040384
        %vm601 = vsmask.f32 256
        %vm602 = vmand %vm600, %vm601
        %vm603 = vcmask 716804
        %vm604 = vsmask.f32 4352
        %vm605 = vmand %vm603, %vm604
        %vm606 = vmor %vm605, %vm602
        %v607 = vld [vmem:[#allocation2 + $0x8] sm:$0x11]
        %v608 = vsel %vm606, %v593, %v607
        %609 = vst [vmem:[#allocation2 + $0x8] sm:$0x11] %v608
        %v610 = vld [vmem:[#allocation2] sm:$0x33]
        %v611 = vld [vmem:[#allocation2] sm:$0xcc]
        %v612 = vld [vmem:[#allocation2 + $0x8] sm:$0x11]
        %v613 = vld [vmem:[#allocation2] sm:$0x77]
        %v615 = vunpack.c.l.b16 %v610
        %v616 = vunpack.c.h.b16 %v610
        %v617 = vpack.c.b16 %v615, %v615
        %v618 = vpack.c.b16 %v616, %v616
        %v622 = vunpack.c.l.b16 %v611
        %v623 = vunpack.c.h.b16 %v611
        %v624 = vunpack.c.l.b16 %v612
        %v625 = vunpack.c.h.b16 %v612
        %v626 = vpack.c.b16 %v624, %v622
        %v627 = vpack.c.b16 %v625, %v623
        %v629 = vshrl.u32 %v626, 16
        %v631 = vrot.slane %v629, 2
        %v632 = vshll.u32 %v626, 16
        %v634 = vrot.slane %v632, 3
        %v635 = vor.u32 %v631, %v634
        %v637 = vshrl.u32 %v627, 16
        %v639 = vrot.slane %v637, 2
        %v640 = vshll.u32 %v627, 16
        %v642 = vrot.slane %v640, 3
        %v643 = vor.u32 %v639, %v642
        %644 = vrot.lane.b32.xlu0 %v635, 88
        %v645 = vpop.permute.xlu0 %644
        %646 = vrot.lane.b32.xlu0 %v643, 88
        %v647 = vpop.permute.xlu0 %646
        %vm648 = vcmask 719872
        %v649 = vsel %vm648, %v645, %v647
        %v652 = vunpack.c.l.b16 %v613
        %v653 = vunpack.c.h.b16 %v613
        %v654 = vpack.c.b16 %v652, %v652
        %v655 = vpack.c.b16 %v653, %v653
        %v657 = vshrl.u32 %v654, 16
        %v659 = vshll.u32 %v654, 16
        %v661 = vrot.slane %v659, 1
        %v662 = vor.u32 %v657, %v661
        %v664 = vshrl.u32 %v655, 16
        %v666 = vshll.u32 %v655, 16
        %v668 = vrot.slane %v666, 1
        %v669 = vor.u32 %v664, %v668
        %670 = vrot.lane.b32.xlu0 %v662, 48
        %v671 = vpop.permute.xlu0 %670
        %672 = vrot.lane.b32.xlu0 %v669, 48
        %v673 = vpop.permute.xlu0 %672
        %vm674 = vcmask 392192
        %v675 = vsel %vm674, %v671, %v673
        %vm677 = vcmask 719872
        %v680 = vsel %vm677, %v618, %v645
        %vm682 = vcmask 392192
        %v685 = vsel %vm682, %v647, %v671
        %v687 = vld [vmem:[%s3] sm:$0xff]
        %v688 = vld [vmem:[%s3 + $0x8] sm:$0xff]
        %v689 = vld [vmem:[%s3 + $0x10] sm:$0xff]
        %v690 = vld [vmem:[%s3 + $0x18] sm:$0xff]
        %v691 = vld [vmem:[%s3 + $0x20] sm:$0xff]
        %v692 = vld [vmem:[%s3 + $0x28] sm:$0xff]
        %v693 = vld [vmem:[%s3 + $0x30] sm:$0xff]
        %v694 = vld [vmem:[%s3 + $0x38] sm:$0xff]
        %v695 = vld [vmem:[%s3 + $0x40] sm:$0xff]
        %v696 = vld [vmem:[%s3 + $0x48] sm:$0xff]
        %v697 = vld [vmem:[%s3 + $0x50] sm:$0xff]
        %v698 = vld [vmem:[%s3 + $0x58] sm:$0xff]
        %v699 = vld [vmem:[%s3 + $0x60] sm:$0xff]
        %v700 = vld [vmem:[%s3 + $0x68] sm:$0xff]
        %v701 = vld [vmem:[%s3 + $0x70] sm:$0xff]
        %v702 = vld [vmem:[%s3 + $0x78] sm:$0xff]
        %v703 = vld [vmem:[%s3 + $0x80] sm:$0xff]
        %v704 = vld [vmem:[%s3 + $0x88] sm:$0xff]
        %v705 = vld [vmem:[%s3 + $0x90] sm:$0xff]
        %v706 = vld [vmem:[%s3 + $0x98] sm:$0xff]
        %v707 = vld [vmem:[%s3 + $0xa0] sm:$0xff]
        %v708 = vld [vmem:[%s3 + $0xa8] sm:$0xff]
        %v709 = vld [vmem:[%s3 + $0xb0] sm:$0xff]
        %v710 = vld [vmem:[%s3 + $0xb8] sm:$0xff]
        %v711 = vld [vmem:[%s3 + $0xc0] sm:$0xff]
        %v712 = vld [vmem:[%s3 + $0xc8] sm:$0xff]
        %v713 = vld [vmem:[%s3 + $0xd0] sm:$0xff]
        %v714 = vld [vmem:[%s3 + $0xd8] sm:$0xff]
        %v715 = vld [vmem:[%s3 + $0xe0] sm:$0xff]
        %v716 = vld [vmem:[%s3 + $0xe8] sm:$0xff]
        %v717 = vld [vmem:[%s3 + $0xf0] sm:$0xff]
        %v718 = vld [vmem:[%s3 + $0xf8] sm:$0xff]
        %v719 = vld [vmem:[%s3 + $0x100] sm:$0xff]
        %v720 = vld [vmem:[%s3 + $0x108] sm:$0xff]
        %v721 = vld [vmem:[%s3 + $0x110] sm:$0xff]
        %v722 = vld [vmem:[%s3 + $0x118] sm:$0xff]
        %v723 = vld [vmem:[%s3 + $0x120] sm:$0xff]
        %v724 = vld [vmem:[%s3 + $0x128] sm:$0xff]
        %v725 = vld [vmem:[%s3 + $0x130] sm:$0xff]
        %v726 = vld [vmem:[%s3 + $0x138] sm:$0xff]
        %v727 = vld [vmem:[%s3 + $0x140] sm:$0xff]
        %v728 = vld [vmem:[%s3 + $0x148] sm:$0xff]
        %v729 = vld [vmem:[%s3 + $0x150] sm:$0xff]
        %v730 = vld [vmem:[%s3 + $0x158] sm:$0xff]
        %v731 = vld [vmem:[%s3 + $0x160] sm:$0xff]
        %v732 = vld [vmem:[%s3 + $0x168] sm:$0xff]
        %v733 = vld [vmem:[%s3 + $0x170] sm:$0xff]
        %v734 = vld [vmem:[%s3 + $0x178] sm:$0xff]
        %v735 = vld [vmem:[%s3 + $0x180] sm:$0xff]
        %v736 = vld [vmem:[%s3 + $0x188] sm:$0xff]
        %v737 = vld [vmem:[%s3 + $0x190] sm:$0xff]
        %v738 = vld [vmem:[%s3 + $0x198] sm:$0xff]
        %v739 = vld [vmem:[%s3 + $0x1a0] sm:$0xff]
        %v740 = vld [vmem:[%s3 + $0x1a8] sm:$0xff]
        %v741 = vld [vmem:[%s3 + $0x1b0] sm:$0xff]
        %v742 = vld [vmem:[%s3 + $0x1b8] sm:$0xff]
        %v743 = vld [vmem:[%s3 + $0x1c0] sm:$0xff]
        %v744 = vld [vmem:[%s3 + $0x1c8] sm:$0xff]
        %v745 = vld [vmem:[%s3 + $0x1d0] sm:$0xff]
        %v746 = vld [vmem:[%s3 + $0x1d8] sm:$0xff]
        %v747 = vld [vmem:[%s3 + $0x1e0] sm:$0xff]
        %v748 = vld [vmem:[%s3 + $0x1e8] sm:$0xff]
        %v749 = vld [vmem:[%s3 + $0x1f0] sm:$0xff]
        %v750 = vld [vmem:[%s3 + $0x1f8] sm:$0xff]
        %v751 = vld [vmem:[%s3 + $0x200] sm:$0xff]
        %v752 = vld [vmem:[%s3 + $0x208] sm:$0xff]
        %v753 = vld [vmem:[%s3 + $0x210] sm:$0xff]
        %v754 = vld [vmem:[%s3 + $0x218] sm:$0xff]
        %v755 = vld [vmem:[%s3 + $0x220] sm:$0xff]
        %v756 = vld [vmem:[%s3 + $0x228] sm:$0xff]
        %v757 = vld [vmem:[%s3 + $0x230] sm:$0xff]
        %v758 = vld [vmem:[%s3 + $0x238] sm:$0xff]
        %v759 = vld [vmem:[%s3 + $0x240] sm:$0xff]
        %v760 = vld [vmem:[%s3 + $0x248] sm:$0xff]
        %v761 = vld [vmem:[%s3 + $0x250] sm:$0xff]
        %v762 = vld [vmem:[%s3 + $0x258] sm:$0xff]
        %v763 = vld [vmem:[%s3 + $0x260] sm:$0xff]
        %v764 = vld [vmem:[%s3 + $0x268] sm:$0xff]
        %v765 = vld [vmem:[%s3 + $0x270] sm:$0xff]
        %v766 = vld [vmem:[%s3 + $0x278] sm:$0xff]
        %v767 = vld [vmem:[%s3 + $0x280] sm:$0xff]
        %v768 = vld [vmem:[%s4] sm:$0x3]
        %v770 = vlaneseq
        %v771 = vshrl.u32 %v770, 7
        %v772 = vsub.s32 0, %v771
        %v773 = vrot.slane %v768, %v772
        %v774 = vlaneseq
        %v775 = vshrl.u32 %v774, 7
        %v776 = vsub.s32 1, %v775
        %v777 = vrot.slane %v768, %v776
        %v861 = vunpack.c.l.b16 %v687
        %v862 = vunpack.c.h.b16 %v687
        %v863 = vunpack.c.l.b16 %v688
        %v864 = vunpack.c.h.b16 %v688
        %v865 = vunpack.c.l.b16 %v689
        %v866 = vunpack.c.h.b16 %v689
        %v867 = vunpack.c.l.b16 %v690
        %v868 = vunpack.c.h.b16 %v690
        %v869 = vunpack.c.l.b16 %v691
        %v870 = vunpack.c.h.b16 %v691
        %v871 = vunpack.c.l.b16 %v692
        %v872 = vunpack.c.h.b16 %v692
        %v873 = vunpack.c.l.b16 %v693
        %v874 = vunpack.c.h.b16 %v693
        %v875 = vunpack.c.l.b16 %v694
        %v876 = vunpack.c.h.b16 %v694
        %v877 = vunpack.c.l.b16 %v695
        %v878 = vunpack.c.h.b16 %v695
        %v879 = vunpack.c.l.b16 %v696
        %v880 = vunpack.c.h.b16 %v696
        %v881 = vunpack.c.l.b16 %v697
        %v882 = vunpack.c.h.b16 %v697
        %v883 = vunpack.c.l.b16 %v698
        %v884 = vunpack.c.h.b16 %v698
        %v885 = vunpack.c.l.b16 %v699
        %v886 = vunpack.c.h.b16 %v699
        %v887 = vunpack.c.l.b16 %v700
        %v888 = vunpack.c.h.b16 %v700
        %v889 = vunpack.c.l.b16 %v701
        %v890 = vunpack.c.h.b16 %v701
        %v891 = vunpack.c.l.b16 %v702
        %v892 = vunpack.c.h.b16 %v702
        %v893 = vunpack.c.l.b16 %v703
        %v894 = vunpack.c.h.b16 %v703
        %v895 = vunpack.c.l.b16 %v704
        %v896 = vunpack.c.h.b16 %v704
        %v897 = vunpack.c.l.b16 %v705
        %v898 = vunpack.c.h.b16 %v705
        %v899 = vunpack.c.l.b16 %v706
        %v900 = vunpack.c.h.b16 %v706
        %v901 = vunpack.c.l.b16 %v707
        %v902 = vunpack.c.h.b16 %v707
        %v903 = vunpack.c.l.b16 %v708
        %v904 = vunpack.c.h.b16 %v708
        %v905 = vunpack.c.l.b16 %v709
        %v906 = vunpack.c.h.b16 %v709
        %v907 = vunpack.c.l.b16 %v710
        %v908 = vunpack.c.h.b16 %v710
        %v909 = vunpack.c.l.b16 %v711
        %v910 = vunpack.c.h.b16 %v711
        %v911 = vunpack.c.l.b16 %v712
        %v912 = vunpack.c.h.b16 %v712
        %v913 = vunpack.c.l.b16 %v713
        %v914 = vunpack.c.h.b16 %v713
        %v915 = vunpack.c.l.b16 %v714
        %v916 = vunpack.c.h.b16 %v714
        %v917 = vunpack.c.l.b16 %v715
        %v918 = vunpack.c.h.b16 %v715
        %v919 = vunpack.c.l.b16 %v716
        %v920 = vunpack.c.h.b16 %v716
        %v921 = vunpack.c.l.b16 %v717
        %v922 = vunpack.c.h.b16 %v717
        %v923 = vunpack.c.l.b16 %v718
        %v924 = vunpack.c.h.b16 %v718
        %v925 = vunpack.c.l.b16 %v719
        %v926 = vunpack.c.h.b16 %v719
        %v927 = vunpack.c.l.b16 %v720
        %v928 = vunpack.c.h.b16 %v720
        %v929 = vunpack.c.l.b16 %v721
        %v930 = vunpack.c.h.b16 %v721
        %v931 = vunpack.c.l.b16 %v722
        %v932 = vunpack.c.h.b16 %v722
        %v933 = vunpack.c.l.b16 %v723
        %v934 = vunpack.c.h.b16 %v723
        %v935 = vunpack.c.l.b16 %v724
        %v936 = vunpack.c.h.b16 %v724
        %v937 = vunpack.c.l.b16 %v725
        %v938 = vunpack.c.h.b16 %v725
        %v939 = vunpack.c.l.b16 %v726
        %v940 = vunpack.c.h.b16 %v726
        %v941 = vunpack.c.l.b16 %v727
        %v942 = vunpack.c.h.b16 %v727
        %v943 = vunpack.c.l.b16 %v728
        %v944 = vunpack.c.h.b16 %v728
        %v945 = vunpack.c.l.b16 %v729
        %v946 = vunpack.c.h.b16 %v729
        %v947 = vunpack.c.l.b16 %v730
        %v948 = vunpack.c.h.b16 %v730
        %v949 = vunpack.c.l.b16 %v731
        %v950 = vunpack.c.h.b16 %v731
        %v951 = vunpack.c.l.b16 %v732
        %v952 = vunpack.c.h.b16 %v732
        %v953 = vunpack.c.l.b16 %v733
        %v954 = vunpack.c.h.b16 %v733
        %v955 = vunpack.c.l.b16 %v734
        %v956 = vunpack.c.h.b16 %v734
        %v957 = vunpack.c.l.b16 %v735
        %v958 = vunpack.c.h.b16 %v735
        %v959 = vunpack.c.l.b16 %v736
        %v960 = vunpack.c.h.b16 %v736
        %v961 = vunpack.c.l.b16 %v737
        %v962 = vunpack.c.h.b16 %v737
        %v963 = vunpack.c.l.b16 %v738
        %v964 = vunpack.c.h.b16 %v738
        %v965 = vunpack.c.l.b16 %v739
        %v966 = vunpack.c.h.b16 %v739
        %v967 = vunpack.c.l.b16 %v740
        %v968 = vunpack.c.h.b16 %v740
        %v969 = vunpack.c.l.b16 %v741
        %v970 = vunpack.c.h.b16 %v741
        %v971 = vunpack.c.l.b16 %v742
        %v972 = vunpack.c.h.b16 %v742
        %v973 = vunpack.c.l.b16 %v743
        %v974 = vunpack.c.h.b16 %v743
        %v975 = vunpack.c.l.b16 %v744
        %v976 = vunpack.c.h.b16 %v744
        %v977 = vunpack.c.l.b16 %v745
        %v978 = vunpack.c.h.b16 %v745
        %v979 = vunpack.c.l.b16 %v746
        %v980 = vunpack.c.h.b16 %v746
        %v981 = vunpack.c.l.b16 %v747
        %v982 = vunpack.c.h.b16 %v747
        %v983 = vunpack.c.l.b16 %v748
        %v984 = vunpack.c.h.b16 %v748
        %v985 = vunpack.c.l.b16 %v749
        %v986 = vunpack.c.h.b16 %v749
        %v987 = vunpack.c.l.b16 %v750
        %v988 = vunpack.c.h.b16 %v750
        %v989 = vunpack.c.l.b16 %v751
        %v990 = vunpack.c.h.b16 %v751
        %v991 = vunpack.c.l.b16 %v752
        %v992 = vunpack.c.h.b16 %v752
        %v993 = vunpack.c.l.b16 %v753
        %v994 = vunpack.c.h.b16 %v753
        %v995 = vunpack.c.l.b16 %v754
        %v996 = vunpack.c.h.b16 %v754
        %v997 = vunpack.c.l.b16 %v755
        %v998 = vunpack.c.h.b16 %v755
        %v999 = vunpack.c.l.b16 %v756
        %v1000 = vunpack.c.h.b16 %v756
        %v1001 = vunpack.c.l.b16 %v757
        %v1002 = vunpack.c.h.b16 %v757
        %v1003 = vunpack.c.l.b16 %v758
        %v1004 = vunpack.c.h.b16 %v758
        %v1005 = vunpack.c.l.b16 %v759
        %v1006 = vunpack.c.h.b16 %v759
        %v1007 = vunpack.c.l.b16 %v760
        %v1008 = vunpack.c.h.b16 %v760
        %v1009 = vunpack.c.l.b16 %v761
        %v1010 = vunpack.c.h.b16 %v761
        %v1011 = vunpack.c.l.b16 %v762
        %v1012 = vunpack.c.h.b16 %v762
        %v1013 = vunpack.c.l.b16 %v763
        %v1014 = vunpack.c.h.b16 %v763
        %v1015 = vunpack.c.l.b16 %v764
        %v1016 = vunpack.c.h.b16 %v764
        %v1017 = vunpack.c.l.b16 %v765
        %v1018 = vunpack.c.h.b16 %v765
        %v1019 = vunpack.c.l.b16 %v766
        %v1020 = vunpack.c.h.b16 %v766
        %v1021 = vunpack.c.l.b16 %v767
        %v1022 = vunpack.c.h.b16 %v767
        %v1023 = vpack.c.b16 %v863, %v861
        %v1024 = vpack.c.b16 %v864, %v862
        %v1025 = vpack.c.b16 %v867, %v865
        %v1026 = vpack.c.b16 %v868, %v866
        %v1027 = vpack.c.b16 %v871, %v869
        %v1028 = vpack.c.b16 %v872, %v870
        %v1029 = vpack.c.b16 %v875, %v873
        %v1030 = vpack.c.b16 %v876, %v874
        %v1031 = vpack.c.b16 %v879, %v877
        %v1032 = vpack.c.b16 %v880, %v878
        %v1033 = vpack.c.b16 %v883, %v881
        %v1034 = vpack.c.b16 %v884, %v882
        %v1035 = vpack.c.b16 %v887, %v885
        %v1036 = vpack.c.b16 %v888, %v886
        %v1037 = vpack.c.b16 %v891, %v889
        %v1038 = vpack.c.b16 %v892, %v890
        %v1039 = vpack.c.b16 %v895, %v893
        %v1040 = vpack.c.b16 %v896, %v894
        %v1041 = vpack.c.b16 %v899, %v897
        %v1042 = vpack.c.b16 %v900, %v898
        %v1043 = vpack.c.b16 %v903, %v901
        %v1044 = vpack.c.b16 %v904, %v902
        %v1045 = vpack.c.b16 %v907, %v905
        %v1046 = vpack.c.b16 %v908, %v906
        %v1047 = vpack.c.b16 %v911, %v909
        %v1048 = vpack.c.b16 %v912, %v910
        %v1049 = vpack.c.b16 %v915, %v913
        %v1050 = vpack.c.b16 %v916, %v914
        %v1051 = vpack.c.b16 %v919, %v917
        %v1052 = vpack.c.b16 %v920, %v918
        %v1053 = vpack.c.b16 %v923, %v921
        %v1054 = vpack.c.b16 %v924, %v922
        %v1055 = vpack.c.b16 %v927, %v925
        %v1056 = vpack.c.b16 %v928, %v926
        %v1057 = vpack.c.b16 %v931, %v929
        %v1058 = vpack.c.b16 %v932, %v930
        %v1059 = vpack.c.b16 %v935, %v933
        %v1060 = vpack.c.b16 %v936, %v934
        %v1061 = vpack.c.b16 %v939, %v937
        %v1062 = vpack.c.b16 %v940, %v938
        %v1063 = vpack.c.b16 %v943, %v941
        %v1064 = vpack.c.b16 %v944, %v942
        %v1065 = vpack.c.b16 %v947, %v945
        %v1066 = vpack.c.b16 %v948, %v946
        %v1067 = vpack.c.b16 %v951, %v949
        %v1068 = vpack.c.b16 %v952, %v950
        %v1069 = vpack.c.b16 %v955, %v953
        %v1070 = vpack.c.b16 %v956, %v954
        %v1071 = vpack.c.b16 %v959, %v957
        %v1072 = vpack.c.b16 %v960, %v958
        %v1073 = vpack.c.b16 %v963, %v961
        %v1074 = vpack.c.b16 %v964, %v962
        %v1075 = vpack.c.b16 %v967, %v965
        %v1076 = vpack.c.b16 %v968, %v966
        %v1077 = vpack.c.b16 %v971, %v969
        %v1078 = vpack.c.b16 %v972, %v970
        %v1079 = vpack.c.b16 %v975, %v973
        %v1080 = vpack.c.b16 %v976, %v974
        %v1081 = vpack.c.b16 %v979, %v977
        %v1082 = vpack.c.b16 %v980, %v978
        %v1083 = vpack.c.b16 %v983, %v981
        %v1084 = vpack.c.b16 %v984, %v982
        %v1085 = vpack.c.b16 %v987, %v985
        %v1086 = vpack.c.b16 %v988, %v986
        %v1087 = vpack.c.b16 %v991, %v989
        %v1088 = vpack.c.b16 %v992, %v990
        %v1089 = vpack.c.b16 %v995, %v993
        %v1090 = vpack.c.b16 %v996, %v994
        %v1091 = vpack.c.b16 %v999, %v997
        %v1092 = vpack.c.b16 %v1000, %v998
        %v1093 = vpack.c.b16 %v1003, %v1001
        %v1094 = vpack.c.b16 %v1004, %v1002
        %v1095 = vpack.c.b16 %v1007, %v1005
        %v1096 = vpack.c.b16 %v1008, %v1006
        %v1097 = vpack.c.b16 %v1011, %v1009
        %v1098 = vpack.c.b16 %v1012, %v1010
        %v1099 = vpack.c.b16 %v1015, %v1013
        %v1100 = vpack.c.b16 %v1016, %v1014
        %v1101 = vpack.c.b16 %v1019, %v1017
        %v1102 = vpack.c.b16 %v1020, %v1018
        %v1103 = vpack.c.b16 %v1021, %v1021
        %v1104 = vpack.c.b16 %v1022, %v1022
        %vm1185 = vcmask 64512
        %v1187 = vsel %vm1185, %v673, 0
        %v1190 = vsel %vm596, %v1103, 0
        %v1193 = vsel %vm596, %v1104, 0
        %1195 = vmatprep.subr.bf16.mxu0 %v1038
        %1196 = vmatpush1.bf16.msra.mxu0 %v1037
        %1197 = vmatprep.subr.bf16.mxu0 %v1036
        %1198 = vmatpush1.bf16.msra.mxu0 %v1035
        %1199 = vmatprep.subr.bf16.mxu0 %v1034
        %1200 = vmatpush1.bf16.msra.mxu0 %v1033
        %1201 = vmatprep.subr.bf16.mxu0 %v1032
        %1202 = vmatpush1.bf16.msra.mxu0 %v1031
        %1203 = vmatprep.subr.bf16.mxu0 %v1030
        %1204 = vmatpush1.bf16.msra.mxu0 %v1029
        %1205 = vmatprep.subr.bf16.mxu0 %v1028
        %1206 = vmatpush1.bf16.msra.mxu0 %v1027
        %1207 = vmatprep.subr.bf16.mxu0 %v1026
        %1208 = vmatpush1.bf16.msra.mxu0 %v1025
        %1209 = vmatprep.subr.bf16.mxu0 %v1024
        %1210 = vmatpush1.bf16.msra.mxu0 %v1023
        %1211 = vmatprep.subr.bf16.mxu0 %v1054
        %1212 = vmatpush2.bf16.msra.mxu0 %v1053
        %1213 = vmatprep.subr.bf16.mxu0 %v1052
        %1214 = vmatpush2.bf16.msra.mxu0 %v1051
        %1215 = vmatprep.subr.bf16.mxu0 %v1050
        %1216 = vmatpush2.bf16.msra.mxu0 %v1049
        %1217 = vmatprep.subr.bf16.mxu0 %v1048
        %1218 = vmatpush2.bf16.msra.mxu0 %v1047
        %1219 = vmatprep.subr.bf16.mxu0 %v1046
        %1220 = vmatpush2.bf16.msra.mxu0 %v1045
        %1221 = vmatprep.subr.bf16.mxu0 %v1044
        %1222 = vmatpush2.bf16.msra.mxu0 %v1043
        %1223 = vmatprep.subr.bf16.mxu0 %v1042
        %1224 = vmatpush2.bf16.msra.mxu0 %v1041
        %1225 = vmatprep.subr.bf16.mxu0 %v1040
        %1226 = vmatpush2.bf16.msra.mxu0 %v1039
        %1227 = vmatprep.mubr.bf16.mxu0 %v680
        %1228 = vmatmul.mubr.bf16.gmra.mxu0 %v617
        %v1229 = vpop.f32.mrf.mxu0
        %v1230 = vadd.f32 %v773, %v1229
        %v1231 = vpop.f32.mrf.mxu0
        %v1232 = vadd.f32 %v777, %v1231
        %v1233 = vpop.f32.mrf.mxu0
        %v1234 = vpop.f32.mrf.mxu0
        %1235 = vdwg.mxu0
        %1236 = vmatprep.subr.bf16.mxu0 %v1070
        %1237 = vmatpush1.bf16.msra.mxu0 %v1069
        %1238 = vmatprep.subr.bf16.mxu0 %v1068
        %1239 = vmatpush1.bf16.msra.mxu0 %v1067
        %1240 = vmatprep.subr.bf16.mxu0 %v1066
        %1241 = vmatpush1.bf16.msra.mxu0 %v1065
        %1242 = vmatprep.subr.bf16.mxu0 %v1064
        %1243 = vmatpush1.bf16.msra.mxu0 %v1063
        %1244 = vmatprep.subr.bf16.mxu0 %v1062
        %1245 = vmatpush1.bf16.msra.mxu0 %v1061
        %1246 = vmatprep.subr.bf16.mxu0 %v1060
        %1247 = vmatpush1.bf16.msra.mxu0 %v1059
        %1248 = vmatprep.subr.bf16.mxu0 %v1058
        %1249 = vmatpush1.bf16.msra.mxu0 %v1057
        %1250 = vmatprep.subr.bf16.mxu0 %v1056
        %1251 = vmatpush1.bf16.msra.mxu0 %v1055
        %1252 = vmatprep.subr.bf16.mxu0 %v1086
        %1253 = vmatpush2.bf16.msra.mxu0 %v1085
        %1254 = vmatprep.subr.bf16.mxu0 %v1084
        %1255 = vmatpush2.bf16.msra.mxu0 %v1083
        %1256 = vmatprep.subr.bf16.mxu0 %v1082
        %1257 = vmatpush2.bf16.msra.mxu0 %v1081
        %1258 = vmatprep.subr.bf16.mxu0 %v1080
        %1259 = vmatpush2.bf16.msra.mxu0 %v1079
        %1260 = vmatprep.subr.bf16.mxu0 %v1078
        %1261 = vmatpush2.bf16.msra.mxu0 %v1077
        %1262 = vmatprep.subr.bf16.mxu0 %v1076
        %1263 = vmatpush2.bf16.msra.mxu0 %v1075
        %1264 = vmatprep.subr.bf16.mxu0 %v1074
        %1265 = vmatpush2.bf16.msra.mxu0 %v1073
        %1266 = vmatprep.subr.bf16.mxu0 %v1072
        %1267 = vmatpush2.bf16.msra.mxu0 %v1071
        %1268 = vmatprep.mubr.bf16.mxu0 %v685
        %1269 = vmatmul.mubr.bf16.gmra.mxu0 %v649
        %v1270 = vpop.f32.mrf.mxu0
        %v1271 = vadd.f32 %v1230, %v1270
        %v1272 = vpop.f32.mrf.mxu0
        %v1273 = vadd.f32 %v1232, %v1272
        %v1274 = vpop.f32.mrf.mxu0
        %v1275 = vpop.f32.mrf.mxu0
        %1276 = vdwg.mxu0
        %1277 = vmatprep.subr.bf16.mxu0 %v1102
        %1278 = vmatpush1.bf16.msra.mxu0 %v1101
        %1279 = vmatprep.subr.bf16.mxu0 %v1100
        %1280 = vmatpush1.bf16.msra.mxu0 %v1099
        %1281 = vmatprep.subr.bf16.mxu0 %v1098
        %1282 = vmatpush1.bf16.msra.mxu0 %v1097
        %1283 = vmatprep.subr.bf16.mxu0 %v1096
        %1284 = vmatpush1.bf16.msra.mxu0 %v1095
        %1285 = vmatprep.subr.bf16.mxu0 %v1094
        %1286 = vmatpush1.bf16.msra.mxu0 %v1093
        %1287 = vmatprep.subr.bf16.mxu0 %v1092
        %1288 = vmatpush1.bf16.msra.mxu0 %v1091
        %1289 = vmatprep.subr.bf16.mxu0 %v1090
        %1290 = vmatpush1.bf16.msra.mxu0 %v1089
        %1291 = vmatprep.subr.bf16.mxu0 %v1088
        %1292 = vmatpush1.bf16.msra.mxu0 %v1087
        %1293 = vmatprep.subr.bf16.mxu0 0
        %1294 = vmatpush2.bf16.msra.mxu0 0
        %1295 = vmatprep.subr.bf16.mxu0 0
        %1296 = vmatpush2.bf16.msra.mxu0 0
        %1297 = vmatprep.subr.bf16.mxu0 0
        %1298 = vmatpush2.bf16.msra.mxu0 0
        %1299 = vmatprep.subr.bf16.mxu0 0
        %1300 = vmatpush2.bf16.msra.mxu0 0
        %1301 = vmatprep.subr.bf16.mxu0 0
        %1302 = vmatpush2.bf16.msra.mxu0 0
        %1303 = vmatprep.subr.bf16.mxu0 0
        %1304 = vmatpush2.bf16.msra.mxu0 0
        %1305 = vmatprep.subr.bf16.mxu0 0
        %1306 = vmatpush2.bf16.msra.mxu0 0
        %1307 = vmatprep.subr.bf16.mxu0 %v1193
        %1308 = vmatpush2.bf16.msra.mxu0 %v1190
        %1309 = vmatprep.mubr.bf16.mxu0 %v1187
        %1310 = vmatmul.mubr.bf16.gmra.mxu0 %v675
        %v1311 = vpop.f32.mrf.mxu0
        %v1312 = vadd.f32 %v1271, %v1311
        %v1313 = vpop.f32.mrf.mxu0
        %v1314 = vadd.f32 %v1273, %v1313
        %v1315 = vpop.f32.mrf.mxu0
        %v1316 = vpop.f32.mrf.mxu0
        %1317 = vdwg.mxu0
        %1319 = vrot.lane.b32.xlu0 %v1312, 80
        %v1320 = vpop.permute.xlu0 %1319
        %1323 = vrot.lane.b32.xlu0 %v1312, 32
        %v1324 = vpop.permute.xlu0 %1323
        %1325 = vrot.lane.b32.xlu0 %v1314, 32
        %v1326 = vpop.permute.xlu0 %1325
        %v1327 = vsel %vm470, %v1324, %v1326
        %1329 = vrot.lane.b32.xlu0 %v1314, 112
        %v1330 = vpop.permute.xlu0 %1329
        %v1332 = vcombine.low %v1312, %v1327
        %v1334 = vunpack.c.l.s4 1983009808
        %v1335 = vunpack.c.0.s8 %v1334
        %v1336 = vlaneseq
        %v1337 = vshrl.u32 %v1336, 7
        %v1338 = vsub.s32 %v1335, %v1337
        %v1339 = vrot.slane %v1332, %v1338
        %v1340 = vcombine.low %v1320, %v1330
        %v1342 = vunpack.c.l.s4 1983009808
        %v1343 = vunpack.c.0.s8 %v1342
        %v1344 = vlaneseq
        %v1345 = vshrl.u32 %v1344, 7
        %v1346 = vsub.s32 %v1343, %v1345
        %v1347 = vrot.slane %v1340, %v1346
        %v1348 = vcombine.low %v1339, %v1347
        %v1349 = vcombine.high %v1339, %v1347
        %v1351 = vunpack.c.l.s4 1934713408
        %v1352 = vunpack.c.0.s8 %v1351
        %v1353 = vlaneseq
        %v1354 = vshrl.u32 %v1353, 7
        %v1355 = vsub.s32 %v1352, %v1354
        %v1356 = vrot.slane %v1348, %v1355
        %v1358 = vunpack.c.l.s4 1934713408
        %v1359 = vunpack.c.0.s8 %v1358
        %v1360 = vlaneseq
        %v1361 = vshrl.u32 %v1360, 7
        %v1362 = vsub.s32 %v1359, %v1361
        %v1363 = vrot.slane %v1349, %v1362
        %v1364 = vcombine.high %v1356, 0.0
        %v1365 = vcombine.high %v1363, 0.0
        %vm1366 = vcmask 388096
        %v1367 = vsel %vm1366, %v1356, -inf
        %v1368 = vrot.slane %v1367, 4
        %v1369 = vmax.f32 %v1367, %v1368
        %v1370 = vrot.slane %v1369, 2
        %v1371 = vmax.f32 %v1369, %v1370
        %v1372 = vrot.slane %v1371, 1
        %v1373 = vmax.f32 %v1371, %v1372
        %v1374 = vsel %vm1366, %v1364, -inf
        %v1375 = vrot.slane %v1374, 4
        %v1376 = vmax.f32 %v1374, %v1375
        %v1377 = vrot.slane %v1376, 2
        %v1378 = vmax.f32 %v1376, %v1377
        %v1379 = vrot.slane %v1378, 1
        %v1380 = vmax.f32 %v1378, %v1379
        %v1381 = vsel %vm1366, %v1363, -inf
        %v1382 = vrot.slane %v1381, 4
        %v1383 = vmax.f32 %v1381, %v1382
        %v1384 = vrot.slane %v1383, 2
        %v1385 = vmax.f32 %v1383, %v1384
        %v1386 = vrot.slane %v1385, 1
        %v1387 = vmax.f32 %v1385, %v1386
        %v1388 = vsel %vm1366, %v1365, -inf
        %v1389 = vrot.slane %v1388, 4
        %v1390 = vmax.f32 %v1388, %v1389
        %v1391 = vrot.slane %v1390, 2
        %v1392 = vmax.f32 %v1390, %v1391
        %v1393 = vrot.slane %v1392, 1
        %v1394 = vmax.f32 %v1392, %v1393
        %v1395 = vsel %vm682, %v1373, -inf
        %v1396 = vsel %vm682, %v1380, -inf
        %v1397 = vsel %vm682, %v1387, -inf
        %v1398 = vsel %vm682, %v1394, -inf
        %v1399 = vmax.f32 %v1395, %v1396
        %v1400 = vmax.f32 %v1397, %v1398
        %v1401 = vmax.f32 %v1399, %v1400
        %vm1402 = vcmask 385024
        %1403 = vst.msk [vmem:[%s216] sm:$0x1] %vm1402, %v1401
        %s1404 = sand.u32 %s137, 1
        %s1405 = scalar_lea.sflag [#allocation4], %s1404
        %s1406 = sand.u32 %s137, 1
        %s1407 = scalar_lea.vmem [#allocation3], %s1406
        // Predicated region
        $region41: #{net_forward.1} parent=39 // pred_check
          %p1408 = pneg %p147
        $region42: #{net_forward.1} parent=39 // pred_check_branch
          %1410 = sbr.rel (%p1408) target = $region44
        $region43: #{net_forward.1} parent=39 // pred_region
          %s1412 = ssub.s32 16, 16
          %1413 = vsyncadd %s1405, %s1412
          %s1414 = smul.addr %s19, 16
          %s1415 = scalar_lea.hbm %s5, %s1414
          %s1417 = sshll.u32 %s1407, 4
          %s1418 = int_to_ptr.vmem [resolvable:$true] %s1417
          %1420 = dma.vmem_to_hbm [thread:$0]  %s1418, 16, %s1415, %s1405
        $region44: #{net_forward.1} parent=39 // pred_fallthru
          _
      $region40: #{net_forward.1} parent=5 // pred_fallthru
        _
      %p1421 = scmp.le.s32.totalorder 2, %s14
      // Predicated region
      $region45: #{net_forward.1} parent=5 // pred_check
        %p1422 = pneg %p1421
      $region46: #{net_forward.1} parent=5 // pred_check_branch
        %1424 = sbr.rel (%p1422) target = $region48
      $region47: #{net_forward.1} parent=5 // pred_region
        %s1425 = ssub.s32 %s14, 2
        // Predicated region
        $region49: #{net_forward.1} parent=47 // pred_check
          %p1426 = pneg %p153
        $region50: #{net_forward.1} parent=47 // pred_check_branch
          %1428 = sbr.rel (%p1426) target = $region52
        $region51: #{net_forward.1} parent=47 // pred_region
          %s1429 = sand.u32 %s138, 1
          %s1430 = scalar_lea.sflag [#allocation4], %s1429
          %s1431 = sand.u32 %s138, 1
          %s1432 = scalar_lea.vmem [#allocation3], %s1431
          %1433 = dma.done %s1430, 16
        $region52: #{net_forward.1} parent=47 // pred_fallthru
          _
      $region48: #{net_forward.1} parent=5 // pred_fallthru
        _
    $region6: #{net_forward.1} parent=1 // loop_footer
      %s18 = sadd.s32 1, %s14
    $region7: #{net_forward.1} parent=1 // loop_footer_branch
      %13 = sbr.rel target = $region3
    $region8: #{net_forward.1} parent=1 // loop_exit
      _
    %1434 = vsyncpa [#allocation4], 1
    %s1435 = scalar_lea.sflag [#allocation4], 1
    %1436 = vsyncpa %s1435, 1

</llo_original>
